<compile_context>
chip_gen: v6e
topology: v6e:2x2x1
jax: 0.10.0
libtpu: 0.0.40
codegen_flags: <defaults>
</compile_context>

<pallas_src>
import functools

import jax
import jax.numpy as jnp
from jax.experimental import pallas as pl
from jax.experimental.pallas import tpu as pltpu


# --------------------------------------------------------------------------- #
# Kernel
# --------------------------------------------------------------------------- #
def _attn_kernel(x_ref, wqkv_ref, wo_ref, bo_ref, out_ref, *, heads, dim_head):
    bb, n_tok, dim = x_ref.shape          # (block_b, tokens, D)
    inner = heads * dim_head
    rows = bb * n_tok
    cdt = wqkv_ref.dtype                  # matmul operand dtype (bf16 or f32)

    # ---- Fused QKV projection: one MXU pass over all heads and q/k/v. ----
    # Scale (dim_head**-0.5) is already folded into the q columns of wqkv.
    x2d = x_ref[...].reshape(rows, dim)
    qkv = jnp.dot(x2d.astype(cdt), wqkv_ref[...],
                  preferred_element_type=jnp.float32)      # (rows, 3*inner) f32
    qkv = qkv.reshape(bb, n_tok, 3 * inner)

    # ---- Per-head attention, batched over the batch-block dim. ----
    head_outs = []
    for h in range(heads):                 # static unroll (heads is small)
        c = h * dim_head
        q = qkv[:, :, c:c + dim_head]                              # (bb, N, dh)
        k = qkv[:, :, inner + c:inner + c + dim_head]              # (bb, N, dh)
        v = qkv[:, :, 2 * inner + c:2 * inner + c + dim_head]      # (bb, N, dh)

        s = jnp.einsum("bid,bjd->bij", q.astype(cdt), k.astype(cdt),
                       preferred_element_type=jnp.float32)         # (bb, N, N)
        s = s - jnp.max(s, axis=-1, keepdims=True)
        e = jnp.exp(s)
        p = e * pl.reciprocal(jnp.sum(e, axis=-1, keepdims=True), approx=True)

        head_outs.append(
            jnp.einsum("bij,bjd->bid", p.astype(cdt), v.astype(cdt),
                       preferred_element_type=jnp.float32))        # (bb, N, dh)

    # ---- Lane-dense head assembly + single fused output projection. ----
    o = jnp.concatenate(head_outs, axis=-1).reshape(rows, inner)   # (rows, inner)
    out = jnp.dot(o.astype(cdt), wo_ref[...],
                  preferred_element_type=jnp.float32) + bo_ref[...]
    out_ref[...] = out.reshape(bb, n_tok, dim).astype(out_ref.dtype)
    # TODO(synk): nn.Dropout in to_out is identity here (dropout=0.0 / eval).


# --------------------------------------------------------------------------- #
# Block-size selection (VMEM-budgeted, per-generation)
# --------------------------------------------------------------------------- #
def _vmem_capacity_bytes():
    try:
        return int(pltpu.get_tpu_info().vmem_capacity_bytes)
    except Exception:
        return 64 * 1024 * 1024  # conservative fallback (v7x per-core VMEM)


def _estimate_vmem_bytes(bb, n_tok, dim, inner, x_bytes, out_bytes, w_bytes):
    """Rough per-grid-step VMEM footprint for block_b = bb."""
    rows = bb * n_tok
    # Double-buffered x block + output block.
    io = 2 * rows * dim * x_bytes + 2 * rows * dim * out_bytes
    # Weights (assume double-buffered, worst case) + bias.
    weights = 2 * (dim * 3 * inner + inner * dim) * w_bytes + 2 * dim * 4
    # Live in-kernel values: qkv (f32 + cast), per-head dots/exp (f32),
    # concatenated head outputs (f32 + cast), output before store (f32).
    live = (rows * 3 * inner * (4 + w_bytes)
            + 2 * bb * n_tok * n_tok * 4
            + rows * inner * (4 + w_bytes)
            + rows * dim * 4)
    return io + weights + live


def _pick_block_b(B, n_tok, dim, inner, budget,
                  x_bytes, out_bytes, w_bytes, min_steps):
    divisors = [d for d in range(1, B + 1) if B % d == 0]

    def fits(d):
        return _estimate_vmem_bytes(d, n_tok, dim, inner,
                                    x_bytes, out_bytes, w_bytes) <= budget

    # Pass 1: fits, grid at least min_steps deep, even-length (both v7x TCs).
    for d in sorted(divisors, reverse=True):
        steps = B // d
        if fits(d) and steps >= min_steps and steps % 2 == 0:
            return d
    # Pass 2: fits, grid as deep as the batch allows.
    for d in sorted(divisors, reverse=True):
        if fits(d) and B // d >= min(min_steps, B):
            return d
    # Pass 3: largest block that fits at all; otherwise fall back to 1.
    for d in sorted(divisors, reverse=True):
        if fits(d):
            return d
    return 1


# --------------------------------------------------------------------------- #
# Wrapper
# --------------------------------------------------------------------------- #
def attention_forward(params, x, *, heads, dim_head,
                      matmul_dtype=jnp.bfloat16, block_b=None, min_steps=4):
    """Attention.forward.  x: [B, N, D].  Returns [B, N, D] in x.dtype.

    Assumes project_out=True (the usual CrossViViT configuration); pass an
    identity wo / zero bo otherwise.  block_b (batch rows per grid step) is
    derived from the chip's VMEM if not given.  On v7x consider min_steps=8
    so each TensorCore sees >= 4 pipelined steps.
    """
    B, N, D = x.shape
    inner = heads * dim_head
    scale = dim_head ** -0.5

    # Fold the softmax scale into the q columns of Wqkv (constant weight; free).
    wqkv = params["wqkv"].astype(jnp.float32).at[:, :inner].multiply(scale)
    wqkv = wqkv.astype(matmul_dtype)                 # (D, 3*inner) [q | k | v]
    wo = params["wo"].astype(matmul_dtype)           # (inner, D)
    bo = params["bo"].astype(jnp.float32).reshape(1, D)

    out_dtype = x.dtype
    x_bytes = jnp.dtype(x.dtype).itemsize
    out_bytes = jnp.dtype(out_dtype).itemsize
    w_bytes = jnp.dtype(matmul_dtype).itemsize

    # Per-generation VMEM budget: v5e/v6e (128 MiB) -> 64 MiB scoped,
    # v7x (64 MiB) -> 32 MiB scoped; kernel targets 80% of that.
    vmem_cap = _vmem_capacity_bytes()
    scoped_limit = min(vmem_cap // 2, 64 * 1024 * 1024)
    budget = int(scoped_limit * 0.8)

    if block_b is None:
        block_b = _pick_block_b(B, N, D, inner, budget,
                                x_bytes, out_bytes, w_bytes, min_steps)
    assert B % block_b == 0, "batch must be divisible by block_b"
    grid = (B // block_b,)

    kernel = functools.partial(_attn_kernel, heads=heads, dim_head=dim_head)

    grid_spec = pltpu.PrefetchScalarGridSpec(
        num_scalar_prefetch=0,
        grid=grid,
        in_specs=[
            pl.BlockSpec((block_b, N, D), lambda g: (g, 0, 0)),
            pl.BlockSpec((D, 3 * inner), lambda g: (0, 0)),
            pl.BlockSpec((inner, D), lambda g: (0, 0)),
            pl.BlockSpec((1, D), lambda g: (0, 0)),
        ],
        out_specs=pl.BlockSpec((block_b, N, D), lambda g: (g, 0, 0)),
    )
    return pl.pallas_call(
        kernel,
        out_shape=jax.ShapeDtypeStruct((B, N, D), out_dtype),
        grid_spec=grid_spec,
        compiler_params=pltpu.CompilerParams(
            dimension_semantics=("parallel",),
            vmem_limit_bytes=scoped_limit),
    )(x, wqkv, wo, bo)


# --------------------------------------------------------------------------- #
# Params + pure-JAX reference
# --------------------------------------------------------------------------- #
def init_params(key, dim, heads, dim_head):
    inner = heads * dim_head
    k1, k2, k3 = jax.random.split(key, 3)
    return {
        # to_qkv.weight.T, columns ordered [q_heads | k_heads | v_heads]
        "wqkv": jax.random.normal(k1, (dim, 3 * inner), jnp.float32)
                / jnp.sqrt(float(dim)),
        # to_out[0].weight.T and bias
        "wo": jax.random.normal(k2, (inner, dim), jnp.float32)
              / jnp.sqrt(float(inner)),
        "bo": 0.1 * jax.random.normal(k3, (1, dim), jnp.float32),
    }


def _reference(params, x, *, heads):
    """Pure-JAX reference of the PyTorch forward (for correctness check)."""
    B, N, D = x.shape
    wqkv, wo, bo = params["wqkv"], params["wo"], params["bo"]
    inner = wo.shape[0]
    dh = inner // heads
    qkv = x @ wqkv
    q, k, v = jnp.split(qkv, 3, axis=-1)

    def split_heads(t):
        return t.reshape(B, N, heads, dh).transpose(0, 2, 1, 3)

    q, k, v = split_heads(q), split_heads(k), split_heads(v)
    dots = jnp.einsum("bhid,bhjd->bhij", q, k) * (dh ** -0.5)
    attn = jax.nn.softmax(dots, axis=-1)
    out = jnp.einsum("bhij,bhjd->bhid", attn, v)
    out = out.transpose(0, 2, 1, 3).reshape(B, N, inner)
    return out @ wo + bo


# --------------------------------------------------------------------------- #
# Demo / correctness check
# --------------------------------------------------------------------------- #
if __name__ == "__main__":
    B, N = 2, 16
    dim, heads, dim_head = 32, 4, 8

    key = jax.random.PRNGKey(0)
    kx, kp = jax.random.split(key)
    x = jax.random.normal(kx, (B, N, dim), jnp.float32)
    params = init_params(kp, dim, heads, dim_head)

    # Optimized path: bf16 MXU operands, f32 accumulation, auto block_b
    # (block_b=1, grid depth 2 at this batch size).
    out_bf16 = jax.block_until_ready(
        attention_forward(params, x, heads=heads, dim_head=dim_head,
                          matmul_dtype=jnp.bfloat16))
    # f32 path with block_b=2 exercises the batched (block_b > 1) code path
    # and validates the kernel structure tightly.
    out_f32 = jax.block_until_ready(
        attention_forward(params, x, heads=heads, dim_head=dim_head,
                          matmul_dtype=jnp.float32, block_b=2))

    ref = _reference(params, x, heads=heads)
    assert out_bf16.shape == (B, N, dim)
    assert jnp.allclose(out_f32, ref, atol=1e-2, rtol=1e-2), \
        float(jnp.max(jnp.abs(out_f32 - ref)))
    assert jnp.allclose(out_bf16, ref, atol=5e-2, rtol=5e-2), \
        float(jnp.max(jnp.abs(out_bf16 - ref)))
    print("KERNEL_OK")
</pallas_src>

<mosaic_0001>
module attributes {stable_mosaic.version = 11 : i64} {
  func.func @_attn_kernel(%arg0: i32, %arg1: memref<1x16x32xf32, #tpu.memory_space<vmem>>, %arg2: memref<32x96xbf16, #tpu.memory_space<vmem>>, %arg3: memref<32x32xbf16, #tpu.memory_space<vmem>>, %arg4: memref<1x32xf32, #tpu.memory_space<vmem>>, %arg5: memref<1x16x32xf32, #tpu.memory_space<vmem>>) attributes {dimension_semantics = [#tpu.dimension_semantics<parallel>], iteration_bounds = array<i64: 2>, scalar_prefetch = 0 : i64, scratch_operands = 0 : i64, tpu.core_type = #tpu.core_type<tc>, window_params = [{transform_indices = @transform_0, window_bounds = array<i64: 1, 16, 32>}, {pipeline_mode = #tpu.pipeline_mode<synchronous>, transform_indices = @transform_1, window_bounds = array<i64: 32, 96>}, {pipeline_mode = #tpu.pipeline_mode<synchronous>, transform_indices = @transform_2, window_bounds = array<i64: 32, 32>}, {pipeline_mode = #tpu.pipeline_mode<synchronous>, transform_indices = @transform_3, window_bounds = array<i64: 1, 32>}, {transform_indices = @transform_4, window_bounds = array<i64: 1, 16, 32>}]} {
    %c0 = arith.constant 0 : index
    %c0_0 = arith.constant 0 : index
    %c0_1 = arith.constant 0 : index
    %0 = vector.load %arg1[%c0, %c0_0, %c0_1] : memref<1x16x32xf32, #tpu.memory_space<vmem>>, vector<1x16x32xf32>
    %1 = vector.shape_cast %0 : vector<1x16x32xf32> to vector<16x32xf32>
    %2 = arith.truncf %1 : vector<16x32xf32> to vector<16x32xbf16>
    %c0_2 = arith.constant 0 : index
    %c0_3 = arith.constant 0 : index
    %3 = vector.load %arg2[%c0_2, %c0_3] : memref<32x96xbf16, #tpu.memory_space<vmem>>, vector<32x96xbf16>
    %cst = arith.constant dense<0.000000e+00> : vector<16x96xf32>
    %4 = tpu.matmul %2, %3, %cst {dimension_numbers = #tpu.dot_dimension_numbers<[1], [0], [0], [1], [0, 0, 1, 1], [], []>} : vector<16x32xbf16>, vector<32x96xbf16>, vector<16x96xf32> -> vector<16x96xf32>
    %5 = vector.shape_cast %4 : vector<16x96xf32> to vector<1x16x96xf32>
    %6 = vector.extract_strided_slice %5 {offsets = [0, 0, 0], sizes = [1, 16, 8], strides = [1, 1, 1]} : vector<1x16x96xf32> to vector<1x16x8xf32>
    %7 = vector.extract_strided_slice %5 {offsets = [0, 0, 32], sizes = [1, 16, 8], strides = [1, 1, 1]} : vector<1x16x96xf32> to vector<1x16x8xf32>
    %8 = vector.extract_strided_slice %5 {offsets = [0, 0, 64], sizes = [1, 16, 8], strides = [1, 1, 1]} : vector<1x16x96xf32> to vector<1x16x8xf32>
    %9 = arith.truncf %6 : vector<1x16x8xf32> to vector<1x16x8xbf16>
    %10 = arith.truncf %7 : vector<1x16x8xf32> to vector<1x16x8xbf16>
    "tpu.trace_start"() <{level = 10 : i32, message = "bid,bjd->bij"}> : () -> ()
    %cst_4 = arith.constant dense<0.000000e+00> : vector<1x16x16xf32>
    %11 = tpu.matmul %9, %10, %cst_4 {dimension_numbers = #tpu.dot_dimension_numbers<[2], [2], [1], [1], [0, 0, 0, 1, 1, 1], [0], [0]>} : vector<1x16x8xbf16>, vector<1x16x8xbf16>, vector<1x16x16xf32> -> vector<1x16x16xf32>
    "tpu.trace_stop"() : () -> ()
    %cst_5 = arith.constant dense<0xFF800000> : vector<1x16xf32>
    %12 = vector.multi_reduction <maximumf>, %11, %cst_5 [2] : vector<1x16x16xf32> to vector<1x16xf32>
    %13 = vector.shape_cast %12 : vector<1x16xf32> to vector<1x16x1xf32>
    %14 = vector.broadcast %13 : vector<1x16x1xf32> to vector<1x16x16xf32>
    %15 = arith.subf %11, %14 : vector<1x16x16xf32>
    %16 = math.exp %15 : vector<1x16x16xf32>
    %cst_6 = arith.constant dense<0.000000e+00> : vector<1x16xf32>
    %17 = vector.multi_reduction <add>, %16, %cst_6 [2] : vector<1x16x16xf32> to vector<1x16xf32>
    %18 = vector.shape_cast %17 : vector<1x16xf32> to vector<1x16x1xf32>
    %19 = tpu.reciprocal %18 {approx = true} : vector<1x16x1xf32> -> vector<1x16x1xf32>
    %20 = vector.broadcast %19 : vector<1x16x1xf32> to vector<1x16x16xf32>
    %21 = arith.mulf %16, %20 : vector<1x16x16xf32>
    %22 = arith.truncf %21 : vector<1x16x16xf32> to vector<1x16x16xbf16>
    %23 = arith.truncf %8 : vector<1x16x8xf32> to vector<1x16x8xbf16>
    "tpu.trace_start"() <{level = 10 : i32, message = "bij,bjd->bid"}> : () -> ()
    %cst_7 = arith.constant dense<0.000000e+00> : vector<1x16x8xf32>
    %24 = tpu.matmul %22, %23, %cst_7 {dimension_numbers = #tpu.dot_dimension_numbers<[2], [1], [1], [2], [0, 0, 0, 1, 1, 2], [0], [0]>} : vector<1x16x16xbf16>, vector<1x16x8xbf16>, vector<1x16x8xf32> -> vector<1x16x8xf32>
    "tpu.trace_stop"() : () -> ()
    %25 = vector.extract_strided_slice %5 {offsets = [0, 0, 8], sizes = [1, 16, 8], strides = [1, 1, 1]} : vector<1x16x96xf32> to vector<1x16x8xf32>
    %26 = vector.extract_strided_slice %5 {offsets = [0, 0, 40], sizes = [1, 16, 8], strides = [1, 1, 1]} : vector<1x16x96xf32> to vector<1x16x8xf32>
    %27 = vector.extract_strided_slice %5 {offsets = [0, 0, 72], sizes = [1, 16, 8], strides = [1, 1, 1]} : vector<1x16x96xf32> to vector<1x16x8xf32>
    %28 = arith.truncf %25 : vector<1x16x8xf32> to vector<1x16x8xbf16>
    %29 = arith.truncf %26 : vector<1x16x8xf32> to vector<1x16x8xbf16>
    "tpu.trace_start"() <{level = 10 : i32, message = "bid,bjd->bij"}> : () -> ()
    %cst_8 = arith.constant dense<0.000000e+00> : vector<1x16x16xf32>
    %30 = tpu.matmul %28, %29, %cst_8 {dimension_numbers = #tpu.dot_dimension_numbers<[2], [2], [1], [1], [0, 0, 0, 1, 1, 1], [0], [0]>} : vector<1x16x8xbf16>, vector<1x16x8xbf16>, vector<1x16x16xf32> -> vector<1x16x16xf32>
    "tpu.trace_stop"() : () -> ()
    %cst_9 = arith.constant dense<0xFF800000> : vector<1x16xf32>
    %31 = vector.multi_reduction <maximumf>, %30, %cst_9 [2] : vector<1x16x16xf32> to vector<1x16xf32>
    %32 = vector.shape_cast %31 : vector<1x16xf32> to vector<1x16x1xf32>
    %33 = vector.broadcast %32 : vector<1x16x1xf32> to vector<1x16x16xf32>
    %34 = arith.subf %30, %33 : vector<1x16x16xf32>
    %35 = math.exp %34 : vector<1x16x16xf32>
    %cst_10 = arith.constant dense<0.000000e+00> : vector<1x16xf32>
    %36 = vector.multi_reduction <add>, %35, %cst_10 [2] : vector<1x16x16xf32> to vector<1x16xf32>
    %37 = vector.shape_cast %36 : vector<1x16xf32> to vector<1x16x1xf32>
    %38 = tpu.reciprocal %37 {approx = true} : vector<1x16x1xf32> -> vector<1x16x1xf32>
    %39 = vector.broadcast %38 : vector<1x16x1xf32> to vector<1x16x16xf32>
    %40 = arith.mulf %35, %39 : vector<1x16x16xf32>
    %41 = arith.truncf %40 : vector<1x16x16xf32> to vector<1x16x16xbf16>
    %42 = arith.truncf %27 : vector<1x16x8xf32> to vector<1x16x8xbf16>
    "tpu.trace_start"() <{level = 10 : i32, message = "bij,bjd->bid"}> : () -> ()
    %cst_11 = arith.constant dense<0.000000e+00> : vector<1x16x8xf32>
    %43 = tpu.matmul %41, %42, %cst_11 {dimension_numbers = #tpu.dot_dimension_numbers<[2], [1], [1], [2], [0, 0, 0, 1, 1, 2], [0], [0]>} : vector<1x16x16xbf16>, vector<1x16x8xbf16>, vector<1x16x8xf32> -> vector<1x16x8xf32>
    "tpu.trace_stop"() : () -> ()
    %44 = vector.extract_strided_slice %5 {offsets = [0, 0, 16], sizes = [1, 16, 8], strides = [1, 1, 1]} : vector<1x16x96xf32> to vector<1x16x8xf32>
    %45 = vector.extract_strided_slice %5 {offsets = [0, 0, 48], sizes = [1, 16, 8], strides = [1, 1, 1]} : vector<1x16x96xf32> to vector<1x16x8xf32>
    %46 = vector.extract_strided_slice %5 {offsets = [0, 0, 80], sizes = [1, 16, 8], strides = [1, 1, 1]} : vector<1x16x96xf32> to vector<1x16x8xf32>
    %47 = arith.truncf %44 : vector<1x16x8xf32> to vector<1x16x8xbf16>
    %48 = arith.truncf %45 : vector<1x16x8xf32> to vector<1x16x8xbf16>
    "tpu.trace_start"() <{level = 10 : i32, message = "bid,bjd->bij"}> : () -> ()
    %cst_12 = arith.constant dense<0.000000e+00> : vector<1x16x16xf32>
    %49 = tpu.matmul %47, %48, %cst_12 {dimension_numbers = #tpu.dot_dimension_numbers<[2], [2], [1], [1], [0, 0, 0, 1, 1, 1], [0], [0]>} : vector<1x16x8xbf16>, vector<1x16x8xbf16>, vector<1x16x16xf32> -> vector<1x16x16xf32>
    "tpu.trace_stop"() : () -> ()
    %cst_13 = arith.constant dense<0xFF800000> : vector<1x16xf32>
    %50 = vector.multi_reduction <maximumf>, %49, %cst_13 [2] : vector<1x16x16xf32> to vector<1x16xf32>
    %51 = vector.shape_cast %50 : vector<1x16xf32> to vector<1x16x1xf32>
    %52 = vector.broadcast %51 : vector<1x16x1xf32> to vector<1x16x16xf32>
    %53 = arith.subf %49, %52 : vector<1x16x16xf32>
    %54 = math.exp %53 : vector<1x16x16xf32>
    %cst_14 = arith.constant dense<0.000000e+00> : vector<1x16xf32>
    %55 = vector.multi_reduction <add>, %54, %cst_14 [2] : vector<1x16x16xf32> to vector<1x16xf32>
    %56 = vector.shape_cast %55 : vector<1x16xf32> to vector<1x16x1xf32>
    %57 = tpu.reciprocal %56 {approx = true} : vector<1x16x1xf32> -> vector<1x16x1xf32>
    %58 = vector.broadcast %57 : vector<1x16x1xf32> to vector<1x16x16xf32>
    %59 = arith.mulf %54, %58 : vector<1x16x16xf32>
    %60 = arith.truncf %59 : vector<1x16x16xf32> to vector<1x16x16xbf16>
    %61 = arith.truncf %46 : vector<1x16x8xf32> to vector<1x16x8xbf16>
    "tpu.trace_start"() <{level = 10 : i32, message = "bij,bjd->bid"}> : () -> ()
    %cst_15 = arith.constant dense<0.000000e+00> : vector<1x16x8xf32>
    %62 = tpu.matmul %60, %61, %cst_15 {dimension_numbers = #tpu.dot_dimension_numbers<[2], [1], [1], [2], [0, 0, 0, 1, 1, 2], [0], [0]>} : vector<1x16x16xbf16>, vector<1x16x8xbf16>, vector<1x16x8xf32> -> vector<1x16x8xf32>
    "tpu.trace_stop"() : () -> ()
    %63 = vector.extract_strided_slice %5 {offsets = [0, 0, 24], sizes = [1, 16, 8], strides = [1, 1, 1]} : vector<1x16x96xf32> to vector<1x16x8xf32>
    %64 = vector.extract_strided_slice %5 {offsets = [0, 0, 56], sizes = [1, 16, 8], strides = [1, 1, 1]} : vector<1x16x96xf32> to vector<1x16x8xf32>
    %65 = vector.extract_strided_slice %5 {offsets = [0, 0, 88], sizes = [1, 16, 8], strides = [1, 1, 1]} : vector<1x16x96xf32> to vector<1x16x8xf32>
    %66 = arith.truncf %63 : vector<1x16x8xf32> to vector<1x16x8xbf16>
    %67 = arith.truncf %64 : vector<1x16x8xf32> to vector<1x16x8xbf16>
    "tpu.trace_start"() <{level = 10 : i32, message = "bid,bjd->bij"}> : () -> ()
    %cst_16 = arith.constant dense<0.000000e+00> : vector<1x16x16xf32>
    %68 = tpu.matmul %66, %67, %cst_16 {dimension_numbers = #tpu.dot_dimension_numbers<[2], [2], [1], [1], [0, 0, 0, 1, 1, 1], [0], [0]>} : vector<1x16x8xbf16>, vector<1x16x8xbf16>, vector<1x16x16xf32> -> vector<1x16x16xf32>
    "tpu.trace_stop"() : () -> ()
    %cst_17 = arith.constant dense<0xFF800000> : vector<1x16xf32>
    %69 = vector.multi_reduction <maximumf>, %68, %cst_17 [2] : vector<1x16x16xf32> to vector<1x16xf32>
    %70 = vector.shape_cast %69 : vector<1x16xf32> to vector<1x16x1xf32>
    %71 = vector.broadcast %70 : vector<1x16x1xf32> to vector<1x16x16xf32>
    %72 = arith.subf %68, %71 : vector<1x16x16xf32>
    %73 = math.exp %72 : vector<1x16x16xf32>
    %cst_18 = arith.constant dense<0.000000e+00> : vector<1x16xf32>
    %74 = vector.multi_reduction <add>, %73, %cst_18 [2] : vector<1x16x16xf32> to vector<1x16xf32>
    %75 = vector.shape_cast %74 : vector<1x16xf32> to vector<1x16x1xf32>
    %76 = tpu.reciprocal %75 {approx = true} : vector<1x16x1xf32> -> vector<1x16x1xf32>
    %77 = vector.broadcast %76 : vector<1x16x1xf32> to vector<1x16x16xf32>
    %78 = arith.mulf %73, %77 : vector<1x16x16xf32>
    %79 = arith.truncf %78 : vector<1x16x16xf32> to vector<1x16x16xbf16>
    %80 = arith.truncf %65 : vector<1x16x8xf32> to vector<1x16x8xbf16>
    "tpu.trace_start"() <{level = 10 : i32, message = "bij,bjd->bid"}> : () -> ()
    %cst_19 = arith.constant dense<0.000000e+00> : vector<1x16x8xf32>
    %81 = tpu.matmul %79, %80, %cst_19 {dimension_numbers = #tpu.dot_dimension_numbers<[2], [1], [1], [2], [0, 0, 0, 1, 1, 2], [0], [0]>} : vector<1x16x16xbf16>, vector<1x16x8xbf16>, vector<1x16x8xf32> -> vector<1x16x8xf32>
    "tpu.trace_stop"() : () -> ()
    %82 = tpu.concatenate %24, %43, %62, %81 in 2 : vector<1x16x8xf32>, vector<1x16x8xf32>, vector<1x16x8xf32>, vector<1x16x8xf32> -> vector<1x16x32xf32>
    %83 = vector.shape_cast %82 : vector<1x16x32xf32> to vector<16x32xf32>
    %84 = arith.truncf %83 : vector<16x32xf32> to vector<16x32xbf16>
    %c0_20 = arith.constant 0 : index
    %c0_21 = arith.constant 0 : index
    %85 = vector.load %arg3[%c0_20, %c0_21] : memref<32x32xbf16, #tpu.memory_space<vmem>>, vector<32x32xbf16>
    %cst_22 = arith.constant dense<0.000000e+00> : vector<16x32xf32>
    %86 = tpu.matmul %84, %85, %cst_22 {dimension_numbers = #tpu.dot_dimension_numbers<[1], [0], [0], [1], [0, 0, 1, 1], [], []>} : vector<16x32xbf16>, vector<32x32xbf16>, vector<16x32xf32> -> vector<16x32xf32>
    %c0_23 = arith.constant 0 : index
    %c0_24 = arith.constant 0 : index
    %87 = vector.load %arg4[%c0_23, %c0_24] : memref<1x32xf32, #tpu.memory_space<vmem>>, vector<1x32xf32>
    %88 = vector.broadcast %87 : vector<1x32xf32> to vector<16x32xf32>
    %89 = arith.addf %86, %88 : vector<16x32xf32>
    %90 = vector.shape_cast %89 : vector<16x32xf32> to vector<1x16x32xf32>
    %c0_25 = arith.constant 0 : index
    %c0_26 = arith.constant 0 : index
    %c0_27 = arith.constant 0 : index
    %91 = vector.load %arg5[%c0_25, %c0_26, %c0_27] : memref<1x16x32xf32, #tpu.memory_space<vmem>>, vector<1x16x32xf32>
    tpu.vector_store %arg5[%c0_25, %c0_26, %c0_27], %90 {strides = array<i32>} : memref<1x16x32xf32, #tpu.memory_space<vmem>>, vector<1x16x32xf32>,
    return
  }
  func.func @transform_0(%arg0: i32) -> (i32, i32, i32) {
    %c0_i32 = arith.constant 0 : i32
    %c0_i32_0 = arith.constant 0 : i32
    %c0_i32_1 = arith.constant 0 : i32
    return %arg0, %c0_i32, %c0_i32_0 : i32, i32, i32
  }
  func.func @transform_1(%arg0: i32) -> (i32, i32) {
    %c0_i32 = arith.constant 0 : i32
    %c0_i32_0 = arith.constant 0 : i32
    %c0_i32_1 = arith.constant 0 : i32
    return %c0_i32, %c0_i32_0 : i32, i32
  }
  func.func @transform_2(%arg0: i32) -> (i32, i32) {
    %c0_i32 = arith.constant 0 : i32
    %c0_i32_0 = arith.constant 0 : i32
    %c0_i32_1 = arith.constant 0 : i32
    return %c0_i32, %c0_i32_0 : i32, i32
  }
  func.func @transform_3(%arg0: i32) -> (i32, i32) {
    %c0_i32 = arith.constant 0 : i32
    %c0_i32_0 = arith.constant 0 : i32
    %c0_i32_1 = arith.constant 0 : i32
    return %c0_i32, %c0_i32_0 : i32, i32
  }
  func.func @transform_4(%arg0: i32) -> (i32, i32, i32) {
    %c0_i32 = arith.constant 0 : i32
    %c0_i32_0 = arith.constant 0 : i32
    %c0_i32_1 = arith.constant 0 : i32
    return %arg0, %c0_i32, %c0_i32_0 : i32, i32, i32
  }
}

</mosaic_0001>

<llo_original>
// kernel: tpu_custom_call.1
$region0: #{tpu_custom_call.1}
  #allocation0 [shape = 'u32[]', space=smem, size = 0x4, offset = 0x4, fixed_abs, tag = 'smem constant byte address 0x4 - core index']
  #allocation1 [shape = 'u32[144,128]{1,0:T(1,128)}', space=vmem, size = 0x12000, scoped, tag = 'internal scratch']
  %s0 = inlined_call_operand.hbm [shape: f32[2,16,32], index: 0, kind: input, shape index: {}]
  %s1 = inlined_call_operand.hbm [shape: bf16[32,96], index: 1, kind: input, shape index: {}]
  %s2 = inlined_call_operand.hbm [shape: bf16[32,32], index: 2, kind: input, shape index: {}]
  %s3 = inlined_call_operand.vmem [shape: f32[1,32], index: 3, kind: input, shape index: {}]
  %s4 = inlined_call_operand.hbm [shape: f32[2,16,32], index: 4, kind: output, shape index: {}]
  %s5 = sld [smem:[#allocation0]]
  $region61: #{tpu_custom_call.1} parent=0
    _
  %s7 = ssub.s32 1, %s5
  %s8 = scalar_select 0, %s7, %s5
  $region1: #{tpu_custom_call.1} parent=0
    #allocation2 [shape = 'u8[16384]{0}', space=vmem, size = 0x4000, scoped, tag = 'input window, operand 0']
    #allocation3 [shape = 's32[2]{0}', space=sflag, size = 0x8, scoped, tag = 'scoped memory for tpu_custom_call.1']
    #allocation4 [shape = 's32[2]{0}', space=sflag, size = 0x8, scoped, tag = 'scoped memory for tpu_custom_call.1']
    #allocation5 [shape = 'u8[8192]{0}', space=vmem, size = 0x2000, scoped, tag = 'input window, operand 1, single buffered']
    #allocation6 [shape = 's32[1]{0}', space=sflag, size = 0x4, scoped, tag = 'scoped memory for tpu_custom_call.1']
    #allocation7 [shape = 'u8[8192]{0}', space=vmem, size = 0x2000, scoped, tag = 'input window, operand 2, single buffered']
    #allocation8 [shape = 'u8[16384]{0}', space=vmem, size = 0x4000, scoped, tag = 'output window, operand 0']
    %9 = vsyncpa [#allocation3], 0
    %s10 = scalar_lea.sflag [#allocation3], 1
    %11 = vsyncpa %s10, 0
    %12 = vsyncpa [#allocation6], 0
    %13 = vsyncpa [#allocation4], 0
    %s14 = scalar_lea.sflag [#allocation4], 1
    %15 = vsyncpa %s14, 0
    loop: start=0, step=1, limit=4
    $region2: #{tpu_custom_call.1} parent=1 // loop_pre_header
      _
    $region3: #{tpu_custom_call.1} parent=1 // loop_header
      %s17 = sphi 0, %s21
      %p18 = scmp.ge.s32.totalorder %s17, 4
      %s27 = sphi 0, %s29
      %s30 = sphi 0, %s27
      %s31 = sphi 0, %s30
      %s47 = sphi 0, %s31
      %s51 = sphi 0, %s51
      %s53 = sphi 0, %s51
      %s54 = sphi 0, %s53
      %s68 = sphi 0, %s54
      %s72 = sphi 0, %s72
      %s74 = sphi 0, %s72
      %s75 = sphi 0, %s74
      %s89 = sphi 0, %s75
      %s93 = sphi 0, %s93
      %s95 = sphi 0, %s93
      %s96 = sphi 0, %s95
      %s110 = sphi 0, %s96
      %s116 = sphi 0, %s118
      %s119 = sphi 0, %s116
      %s120 = sphi 0, %s119
      %s136 = sphi 0, %s120
    $region4: #{tpu_custom_call.1} parent=1 // loop_header_branch
      %20 = sbr.rel (%p18) target = $region8
    $region5: #{tpu_custom_call.1} parent=1 // loop_body
      %s22 = ssub.s32 %s17, 1
      %s23 = ssub.s32 %s17, 2
      %s24 = sadd.s32 %s17, 1
      %s25 = ssub.s32 %s17, %s24
      %p26 = scmp.eq.s32.totalorder %s25, 0
      %s28 = sadd.s32 %s27, 1
      %s29 = scalar_select %p26, %s27, %s28
      %p32 = pneg %p26
      %p33 = scmp.eq.s32.totalorder %s17, 1
      %p34 = por %p32, %p33
      %p35 = scmp.ne.s32.totalorder %s27, %s30
      %p36 = scmp.eq.s32.totalorder %s17, 0
      %p37 = por %p35, %p36
      %p38 = scmp.ne.s32.totalorder %s27, %s30
      %p39 = scmp.eq.s32.totalorder %s22, 1
      %p40 = por %p38, %p39
      %p41 = scmp.ne.s32.totalorder %s30, %s31
      %p42 = scmp.eq.s32.totalorder %s22, 0
      %p43 = por %p41, %p42
      %p44 = scmp.ne.s32.totalorder %s30, %s31
      %p45 = scmp.eq.s32.totalorder %s23, 1
      %p46 = por %p44, %p45
      %p48 = scmp.ne.s32.totalorder %s31, %s47
      %p49 = scmp.eq.s32.totalorder %s23, 0
      %p50 = por %p48, %p49
      %s52 = sadd.s32 %s51, 1
      %p55 = scmp.eq.s32.totalorder %s17, 1
      %p56 = scmp.ne.s32.totalorder %s51, %s53
      %p57 = scmp.eq.s32.totalorder %s17, 0
      %p58 = por %p56, %p57
      %p59 = scmp.ne.s32.totalorder %s51, %s53
      %p60 = scmp.eq.s32.totalorder %s22, 1
      %p61 = por %p59, %p60
      %p62 = scmp.ne.s32.totalorder %s53, %s54
      %p63 = scmp.eq.s32.totalorder %s22, 0
      %p64 = por %p62, %p63
      %p65 = scmp.ne.s32.totalorder %s53, %s54
      %p66 = scmp.eq.s32.totalorder %s23, 1
      %p67 = por %p65, %p66
      %p69 = scmp.ne.s32.totalorder %s54, %s68
      %p70 = scmp.eq.s32.totalorder %s23, 0
      %p71 = por %p69, %p70
      %s73 = sadd.s32 %s72, 1
      %p76 = scmp.eq.s32.totalorder %s17, 1
      %p77 = scmp.ne.s32.totalorder %s72, %s74
      %p78 = scmp.eq.s32.totalorder %s17, 0
      %p79 = por %p77, %p78
      %p80 = scmp.ne.s32.totalorder %s72, %s74
      %p81 = scmp.eq.s32.totalorder %s22, 1
      %p82 = por %p80, %p81
      %p83 = scmp.ne.s32.totalorder %s74, %s75
      %p84 = scmp.eq.s32.totalorder %s22, 0
      %p85 = por %p83, %p84
      %p86 = scmp.ne.s32.totalorder %s74, %s75
      %p87 = scmp.eq.s32.totalorder %s23, 1
      %p88 = por %p86, %p87
      %p90 = scmp.ne.s32.totalorder %s75, %s89
      %p91 = scmp.eq.s32.totalorder %s23, 0
      %p92 = por %p90, %p91
      %s94 = sadd.s32 %s93, 1
      %p97 = scmp.eq.s32.totalorder %s17, 1
      %p98 = scmp.ne.s32.totalorder %s93, %s95
      %p99 = scmp.eq.s32.totalorder %s17, 0
      %p100 = por %p98, %p99
      %p101 = scmp.ne.s32.totalorder %s93, %s95
      %p102 = scmp.eq.s32.totalorder %s22, 1
      %p103 = por %p101, %p102
      %p104 = scmp.ne.s32.totalorder %s95, %s96
      %p105 = scmp.eq.s32.totalorder %s22, 0
      %p106 = por %p104, %p105
      %p107 = scmp.ne.s32.totalorder %s95, %s96
      %p108 = scmp.eq.s32.totalorder %s23, 1
      %p109 = por %p107, %p108
      %p111 = scmp.ne.s32.totalorder %s96, %s110
      %p112 = scmp.eq.s32.totalorder %s23, 0
      %p113 = por %p111, %p112
      %s114 = ssub.s32 %s17, %s24
      %p115 = scmp.eq.s32.totalorder %s114, 0
      %s117 = sadd.s32 %s116, 1
      %s118 = scalar_select %p115, %s116, %s117
      %p121 = pneg %p115
      %p122 = scmp.eq.s32.totalorder %s17, 1
      %p123 = por %p121, %p122
      %p124 = scmp.ne.s32.totalorder %s116, %s119
      %p125 = scmp.eq.s32.totalorder %s17, 0
      %p126 = por %p124, %p125
      %p127 = scmp.ne.s32.totalorder %s116, %s119
      %p128 = scmp.eq.s32.totalorder %s22, 1
      %p129 = por %p127, %p128
      %p130 = scmp.ne.s32.totalorder %s119, %s120
      %p131 = scmp.eq.s32.totalorder %s22, 0
      %p132 = por %p130, %p131
      %p133 = scmp.ne.s32.totalorder %s119, %s120
      %p134 = scmp.eq.s32.totalorder %s23, 1
      %p135 = por %p133, %p134
      %p137 = scmp.ne.s32.totalorder %s120, %s136
      %p138 = scmp.eq.s32.totalorder %s23, 0
      %p139 = por %p137, %p138
      %p140 = scmp.le.s32.totalorder 1, %s17
      %p141 = scmp.lt.s32.totalorder %s17, 3
      %p142 = pnand %p140, %p141
      %p143 = pneg %p142
      // Predicated region
      $region9: #{tpu_custom_call.1} parent=5 // pred_check
        _
      $region10: #{tpu_custom_call.1} parent=5 // pred_check_branch
        %145 = sbr.rel (%p142) target = $region12
      $region11: #{tpu_custom_call.1} parent=5 // pred_region
        %s146 = ssub.s32 %s17, 1
        // Predicated region
        $region13: #{tpu_custom_call.1} parent=11 // pred_check
          %p147 = pneg %p64
        $region14: #{tpu_custom_call.1} parent=11 // pred_check_branch
          %149 = sbr.rel (%p147) target = $region16
        $region15: #{tpu_custom_call.1} parent=11 // pred_region
          %s151 = ssub.s32 256, 256
          %152 = vsyncadd [#allocation6], %s151
          %s153 = sshll.u32 [#allocation5], 4
          %s154 = int_to_ptr.vmem [resolvable:$true] %s153
          %159 = dma.hbm_to_vmem [thread:$0]  %s1, 256, %s154, [#allocation6], 64, 64, 4
        $region16: #{tpu_custom_call.1} parent=11 // pred_fallthru
          _
        // Predicated region
        $region17: #{tpu_custom_call.1} parent=11 // pred_check
          %p160 = pneg %p85
        $region18: #{tpu_custom_call.1} parent=11 // pred_check_branch
          %162 = sbr.rel (%p160) target = $region20
        $region19: #{tpu_custom_call.1} parent=11 // pred_region
          %s164 = ssub.s32 256, 256
          %165 = vsyncadd [#allocation6], %s164
          %s166 = sshll.u32 [#allocation7], 4
          %s167 = int_to_ptr.vmem [resolvable:$true] %s166
          %172 = dma.hbm_to_vmem [thread:$0]  %s2, 256, %s167, [#allocation6], 64, 64, 4
        $region20: #{tpu_custom_call.1} parent=11 // pred_fallthru
          _
        // Predicated region
        $region21: #{tpu_custom_call.1} parent=11 // pred_check
          %p173 = pneg %p106
        $region22: #{tpu_custom_call.1} parent=11 // pred_check_branch
          %175 = sbr.rel (%p173) target = $region24
        $region23: #{tpu_custom_call.1} parent=11 // pred_region
          _
        $region24: #{tpu_custom_call.1} parent=11 // pred_fallthru
          _
      $region12: #{tpu_custom_call.1} parent=5 // pred_fallthru
        _
      %p176 = scmp.lt.s32.totalorder %s17, 2
      // Predicated region
      $region25: #{tpu_custom_call.1} parent=5 // pred_check
        %p177 = pneg %p176
      $region26: #{tpu_custom_call.1} parent=5 // pred_check_branch
        %179 = sbr.rel (%p177) target = $region28
      $region27: #{tpu_custom_call.1} parent=5 // pred_region
        // Predicated region
        $region29: #{tpu_custom_call.1} parent=27 // pred_check
          %p180 = pneg %p37
        $region30: #{tpu_custom_call.1} parent=27 // pred_check_branch
          %182 = sbr.rel (%p180) target = $region32
        $region31: #{tpu_custom_call.1} parent=27 // pred_region
          %s183 = sand.u32 %s27, 1
          %s184 = scalar_lea.sflag [#allocation3], %s183
          %s185 = sand.u32 %s27, 1
          %s186 = smul.addr %s185, 16
          %s187 = scalar_lea.vmem [#allocation2], %s186
          %s189 = ssub.s32 256, 256
          %190 = vsyncadd %s184, %s189
          %s191 = smul.addr %s17, 2
          %s192 = smul.addr %s191, 128
          %s193 = scalar_lea.hbm %s0, %s192
          %s194 = sshll.u32 %s187, 4
          %s195 = int_to_ptr.vmem [resolvable:$true] %s194
          %200 = dma.hbm_to_vmem [thread:$0]  %s193, 256, %s195, %s184, 128, 128, 8
        $region32: #{tpu_custom_call.1} parent=27 // pred_fallthru
          _
      $region28: #{tpu_custom_call.1} parent=5 // pred_fallthru
        _
      %p201 = scmp.le.s32.totalorder 1, %s17
      %p202 = scmp.lt.s32.totalorder %s17, 3
      %p203 = pnand %p201, %p202
      %p204 = pneg %p203
      // Predicated region
      $region33: #{tpu_custom_call.1} parent=5 // pred_check
        _
      $region34: #{tpu_custom_call.1} parent=5 // pred_check_branch
        %206 = sbr.rel (%p203) target = $region36
      $region35: #{tpu_custom_call.1} parent=5 // pred_region
        %s207 = ssub.s32 %s17, 1
        %s208 = sand.u32 %s30, 1
        %s209 = scalar_lea.sflag [#allocation3], %s208
        %s210 = sand.u32 %s30, 1
        %s211 = smul.addr %s210, 16
        %s212 = scalar_lea.vmem [#allocation2], %s211
        // Predicated region
        $region37: #{tpu_custom_call.1} parent=35 // pred_check
          %p213 = pneg %p43
        $region38: #{tpu_custom_call.1} parent=35 // pred_check_branch
          %215 = sbr.rel (%p213) target = $region40
        $region39: #{tpu_custom_call.1} parent=35 // pred_region
          %216 = dma.done %s209, 256
        $region40: #{tpu_custom_call.1} parent=35 // pred_fallthru
          _
        // Predicated region
        $region41: #{tpu_custom_call.1} parent=35 // pred_check
          %p217 = pneg %p64
        $region42: #{tpu_custom_call.1} parent=35 // pred_check_branch
          %219 = sbr.rel (%p217) target = $region44
        $region43: #{tpu_custom_call.1} parent=35 // pred_region
          %220 = dma.done [#allocation6], 256
        $region44: #{tpu_custom_call.1} parent=35 // pred_fallthru
          _
        // Predicated region
        $region45: #{tpu_custom_call.1} parent=35 // pred_check
          %p221 = pneg %p85
        $region46: #{tpu_custom_call.1} parent=35 // pred_check_branch
          %223 = sbr.rel (%p221) target = $region48
        $region47: #{tpu_custom_call.1} parent=35 // pred_region
          %224 = dma.done [#allocation6], 256
        $region48: #{tpu_custom_call.1} parent=35 // pred_fallthru
          _
        %s225 = sand.u32 %s30, 1
        %s226 = scalar_lea.sflag [#allocation3], %s225
        %s227 = sand.u32 %s30, 1
        %s228 = smul.addr %s227, 16
        %s229 = scalar_lea.vmem [#allocation2], %s228
        %p230 = pneg %p43
        %p231 = pneg %p40
        %p232 = pneg %p64
        %p233 = pneg %p61
        %p234 = pneg %p85
        %p235 = pneg %p82
        %p236 = pneg %p106
        %p237 = pneg %p103
        %p238 = pneg %p132
        %p239 = pneg %p129
        %s240 = sand.u32 %s119, 1
        %s241 = scalar_lea.sflag [#allocation4], %s240
        %s242 = sand.u32 %s119, 1
        %s243 = smul.addr %s242, 16
        %s244 = scalar_lea.vmem [#allocation8], %s243
        %v246 = vld [vmem:[%s212] sm:$0xff]
        %v247 = vld [vmem:[%s212 + $0x8] sm:$0xff]
        %v248 = vpack.c.bf16 %v247, %v246
        %v249 = vld [vmem:[#allocation5] sm:$0xf]
        %v250 = vld [vmem:[#allocation5 + $0x4] sm:$0xf]
        %v251 = vld [vmem:[#allocation5 + $0x8] sm:$0xf]
        %v252 = vld [vmem:[#allocation5 + $0xc] sm:$0xf]
        %v257 = vunpack.c.l.b16 %v249
        %v258 = vunpack.c.l.b16 %v250
        %v259 = vunpack.c.l.b16 %v251
        %v260 = vunpack.c.l.b16 %v252
        %v261 = vpack.c.b16 %v258, %v257
        %v262 = vpack.c.b16 %v260, %v259
        %vm265 = vcmask 261120
        %v267 = vsel %vm265, %v248, 0
        %269 = vmatprep.subr.bf16.mxu0 0
        %270 = vmatpush1.bf16.msra.mxu0 0
        %271 = vmatprep.subr.bf16.mxu0 0
        %272 = vmatpush1.bf16.msra.mxu0 0
        %273 = vmatprep.subr.bf16.mxu0 0
        %274 = vmatpush1.bf16.msra.mxu0 0
        %275 = vmatprep.subr.bf16.mxu0 0
        %276 = vmatpush1.bf16.msra.mxu0 0
        %277 = vmatprep.subr.bf16.mxu0 0
        %278 = vmatpush1.bf16.msra.mxu0 0
        %279 = vmatprep.subr.bf16.mxu0 0
        %280 = vmatpush1.bf16.msra.mxu0 0
        %281 = vmatprep.subr.bf16.mxu0 0
        %282 = vmatpush1.bf16.msra.mxu0 %v262
        %283 = vmatprep.subr.bf16.mxu0 0
        %284 = vmatpush1.bf16.msra.mxu0 %v261
        %285 = vmatprep.subr.bf16.mxu0 0
        %286 = vmatpush2.bf16.msra.mxu0 0
        %287 = vmatprep.subr.bf16.mxu0 0
        %288 = vmatpush2.bf16.msra.mxu0 0
        %289 = vmatprep.subr.bf16.mxu0 0
        %290 = vmatpush2.bf16.msra.mxu0 0
        %291 = vmatprep.subr.bf16.mxu0 0
        %292 = vmatpush2.bf16.msra.mxu0 0
        %293 = vmatprep.subr.bf16.mxu0 0
        %294 = vmatpush2.bf16.msra.mxu0 0
        %295 = vmatprep.subr.bf16.mxu0 0
        %296 = vmatpush2.bf16.msra.mxu0 0
        %297 = vmatprep.subr.bf16.mxu0 0
        %298 = vmatpush2.bf16.msra.mxu0 0
        %299 = vmatprep.subr.bf16.mxu0 0
        %300 = vmatpush2.bf16.msra.mxu0 0
        %301 = vmatprep.mubr.bf16.mxu0 0
        %302 = vmatmul.mubr.bf16.gmra.mxu0 %v267
        %v303 = vpop.f32.mrf.mxu0
        %v304 = vadd.f32 0.0, %v303
        %v305 = vpop.f32.mrf.mxu0
        %v306 = vpop.f32.mrf.mxu0
        %v307 = vadd.f32 0.0, %v306
        %v308 = vpop.f32.mrf.mxu0
        %309 = vdwg.mxu0
        %v310 = vpack.c.bf16 %v307, %v304
        %312 = vrot.lane.b32.xlu0 %v310, 96
        %v313 = vpop.permute.xlu0 %312
        %vm314 = vcmask 64512
        %v316 = vsel %vm314, %v310, 0
        %v319 = vsel %vm314, %v313, 0
        %321 = vmatprep.subr.bf16.mxu0 0
        %322 = vmatpush1.bf16.xpose.msra.mxu0 0
        %323 = vmatprep.subr.bf16.mxu0 0
        %324 = vmatpush1.bf16.xpose.msra.mxu0 0
        %325 = vmatprep.subr.bf16.mxu0 0
        %326 = vmatpush1.bf16.xpose.msra.mxu0 0
        %327 = vmatprep.subr.bf16.mxu0 0
        %328 = vmatpush1.bf16.xpose.msra.mxu0 0
        %329 = vmatprep.subr.bf16.mxu0 0
        %330 = vmatpush1.bf16.xpose.msra.mxu0 0
        %331 = vmatprep.subr.bf16.mxu0 0
        %332 = vmatpush1.bf16.xpose.msra.mxu0 0
        %333 = vmatprep.subr.bf16.mxu0 0
        %334 = vmatpush1.bf16.xpose.msra.mxu0 0
        %335 = vmatprep.subr.bf16.mxu0 0
        %336 = vmatpush1.bf16.xpose.msra.mxu0 %v319
        %337 = vmatprep.subr.bf16.mxu0 0
        %338 = vmatpush2.bf16.xpose.msra.mxu0 0
        %339 = vmatprep.subr.bf16.mxu0 0
        %340 = vmatpush2.bf16.xpose.msra.mxu0 0
        %341 = vmatprep.subr.bf16.mxu0 0
        %342 = vmatpush2.bf16.xpose.msra.mxu0 0
        %343 = vmatprep.subr.bf16.mxu0 0
        %344 = vmatpush2.bf16.xpose.msra.mxu0 0
        %345 = vmatprep.subr.bf16.mxu0 0
        %346 = vmatpush2.bf16.xpose.msra.mxu0 0
        %347 = vmatprep.subr.bf16.mxu0 0
        %348 = vmatpush2.bf16.xpose.msra.mxu0 0
        %349 = vmatprep.subr.bf16.mxu0 0
        %350 = vmatpush2.bf16.xpose.msra.mxu0 0
        %351 = vmatprep.subr.bf16.mxu0 0
        %352 = vmatpush2.bf16.xpose.msra.mxu0 0
        %353 = vmatprep.mubr.bf16.mxu0 0
        %354 = vmatmul.mubr.bf16.gmra.mxu0 %v316
        %v355 = vpop.f32.mrf.mxu0
        %v356 = vadd.f32 0.0, %v355
        %v357 = vpop.f32.mrf.mxu0
        %v358 = vpop.f32.mrf.mxu0
        %v359 = vadd.f32 0.0, %v358
        %v360 = vpop.f32.mrf.mxu0
        %361 = vdwg.mxu0
        %vm362 = vcmask 130048
        %v363 = vsel %vm362, %v356, -inf
        %364 = vmax.xlane.f32.xlu0 %v363
        %v365 = vpop.xlane.xlu0 %364
        %v366 = vsel %vm362, %v359, -inf
        %367 = vmax.xlane.f32.xlu0 %v366
        %v368 = vpop.xlane.xlu0 %367
        %v369 = vsub.f32 %v356, %v365
        %v370 = vsub.f32 %v359, %v368
        %v371 = vmul.f32 %v369, 1.442695
        %v372 = vpow.pop %v371
        %v373 = vmul.f32 %v370, 1.442695
        %v374 = vpow.pop %v373
        %v375 = vsel %vm362, %v372, 0.0
        %376 = vadd.xlane.f32.xlu0 %v375
        %v377 = vpop.xlane.xlu0 %376
        %v378 = vsel %vm362, %v374, 0.0
        %379 = vadd.xlane.f32.xlu0 %v378
        %v380 = vpop.xlane.xlu0 %379
        %v381 = vrcp.pop %v377
        %v382 = vrcp.pop %v380
        %v383 = vmul.f32 %v372, %v381
        %v384 = vmul.f32 %v374, %v382
        %v385 = vpack.c.bf16 %v384, %v383
        %386 = vrot.lane.b32.xlu0 %v310, 64
        %v387 = vpop.permute.xlu0 %386
        %v390 = vsel %vm362, %v385, 0
        %392 = vmatprep.subr.bf16.mxu0 0
        %393 = vmatpush1.bf16.msra.mxu0 0
        %394 = vmatprep.subr.bf16.mxu0 0
        %395 = vmatpush1.bf16.msra.mxu0 0
        %396 = vmatprep.subr.bf16.mxu0 0
        %397 = vmatpush1.bf16.msra.mxu0 0
        %398 = vmatprep.subr.bf16.mxu0 0
        %399 = vmatpush1.bf16.msra.mxu0 0
        %400 = vmatprep.subr.bf16.mxu0 0
        %401 = vmatpush1.bf16.msra.mxu0 0
        %402 = vmatprep.subr.bf16.mxu0 0
        %403 = vmatpush1.bf16.msra.mxu0 0
        %404 = vmatprep.subr.bf16.mxu0 0
        %405 = vmatpush1.bf16.msra.mxu0 0
        %406 = vmatprep.subr.bf16.mxu0 0
        %407 = vmatpush1.bf16.msra.mxu0 %v387
        %408 = vmatprep.subr.bf16.mxu0 0
        %409 = vmatpush2.bf16.msra.mxu0 0
        %410 = vmatprep.subr.bf16.mxu0 0
        %411 = vmatpush2.bf16.msra.mxu0 0
        %412 = vmatprep.subr.bf16.mxu0 0
        %413 = vmatpush2.bf16.msra.mxu0 0
        %414 = vmatprep.subr.bf16.mxu0 0
        %415 = vmatpush2.bf16.msra.mxu0 0
        %416 = vmatprep.subr.bf16.mxu0 0
        %417 = vmatpush2.bf16.msra.mxu0 0
        %418 = vmatprep.subr.bf16.mxu0 0
        %419 = vmatpush2.bf16.msra.mxu0 0
        %420 = vmatprep.subr.bf16.mxu0 0
        %421 = vmatpush2.bf16.msra.mxu0 0
        %422 = vmatprep.subr.bf16.mxu0 0
        %423 = vmatpush2.bf16.msra.mxu0 0
        %424 = vmatprep.mubr.bf16.mxu0 0
        %425 = vmatmul.mubr.bf16.gmra.mxu0 %v390
        %v426 = vpop.f32.mrf.mxu0
        %v427 = vadd.f32 0.0, %v426
        %v428 = vpop.f32.mrf.mxu0
        %v429 = vpop.f32.mrf.mxu0
        %v430 = vadd.f32 0.0, %v429
        %v431 = vpop.f32.mrf.mxu0
        %432 = vdwg.mxu0
        %433 = vrot.lane.b32.xlu0 %v310, 120
        %v434 = vpop.permute.xlu0 %433
        %435 = vrot.lane.b32.xlu0 %v310, 88
        %v436 = vpop.permute.xlu0 %435
        %v438 = vsel %vm314, %v434, 0
        %v441 = vsel %vm314, %v436, 0
        %443 = vmatprep.subr.bf16.mxu0 0
        %444 = vmatpush1.bf16.xpose.msra.mxu0 0
        %445 = vmatprep.subr.bf16.mxu0 0
        %446 = vmatpush1.bf16.xpose.msra.mxu0 0
        %447 = vmatprep.subr.bf16.mxu0 0
        %448 = vmatpush1.bf16.xpose.msra.mxu0 0
        %449 = vmatprep.subr.bf16.mxu0 0
        %450 = vmatpush1.bf16.xpose.msra.mxu0 0
        %451 = vmatprep.subr.bf16.mxu0 0
        %452 = vmatpush1.bf16.xpose.msra.mxu0 0
        %453 = vmatprep.subr.bf16.mxu0 0
        %454 = vmatpush1.bf16.xpose.msra.mxu0 0
        %455 = vmatprep.subr.bf16.mxu0 0
        %456 = vmatpush1.bf16.xpose.msra.mxu0 0
        %457 = vmatprep.subr.bf16.mxu0 0
        %458 = vmatpush1.bf16.xpose.msra.mxu0 %v441
        %459 = vmatprep.subr.bf16.mxu0 0
        %460 = vmatpush2.bf16.xpose.msra.mxu0 0
        %461 = vmatprep.subr.bf16.mxu0 0
        %462 = vmatpush2.bf16.xpose.msra.mxu0 0
        %463 = vmatprep.subr.bf16.mxu0 0
        %464 = vmatpush2.bf16.xpose.msra.mxu0 0
        %465 = vmatprep.subr.bf16.mxu0 0
        %466 = vmatpush2.bf16.xpose.msra.mxu0 0
        %467 = vmatprep.subr.bf16.mxu0 0
        %468 = vmatpush2.bf16.xpose.msra.mxu0 0
        %469 = vmatprep.subr.bf16.mxu0 0
        %470 = vmatpush2.bf16.xpose.msra.mxu0 0
        %471 = vmatprep.subr.bf16.mxu0 0
        %472 = vmatpush2.bf16.xpose.msra.mxu0 0
        %473 = vmatprep.subr.bf16.mxu0 0
        %474 = vmatpush2.bf16.xpose.msra.mxu0 0
        %475 = vmatprep.mubr.bf16.mxu0 0
        %476 = vmatmul.mubr.bf16.gmra.mxu0 %v438
        %v477 = vpop.f32.mrf.mxu0
        %v478 = vadd.f32 0.0, %v477
        %v479 = vpop.f32.mrf.mxu0
        %v480 = vpop.f32.mrf.mxu0
        %v481 = vadd.f32 0.0, %v480
        %v482 = vpop.f32.mrf.mxu0
        %483 = vdwg.mxu0
        %v484 = vsel %vm362, %v478, -inf
        %485 = vmax.xlane.f32.xlu0 %v484
        %v486 = vpop.xlane.xlu0 %485
        %v487 = vsel %vm362, %v481, -inf
        %488 = vmax.xlane.f32.xlu0 %v487
        %v489 = vpop.xlane.xlu0 %488
        %v490 = vsub.f32 %v478, %v486
        %v491 = vsub.f32 %v481, %v489
        %v492 = vmul.f32 %v490, 1.442695
        %v493 = vpow.pop %v492
        %v494 = vmul.f32 %v491, 1.442695
        %v495 = vpow.pop %v494
        %v496 = vsel %vm362, %v493, 0.0
        %497 = vadd.xlane.f32.xlu0 %v496
        %v498 = vpop.xlane.xlu0 %497
        %v499 = vsel %vm362, %v495, 0.0
        %500 = vadd.xlane.f32.xlu0 %v499
        %v501 = vpop.xlane.xlu0 %500
        %v502 = vrcp.pop %v498
        %v503 = vrcp.pop %v501
        %v504 = vmul.f32 %v493, %v502
        %v505 = vmul.f32 %v495, %v503
        %v506 = vpack.c.bf16 %v505, %v504
        %507 = vrot.lane.b32.xlu0 %v310, 56
        %v508 = vpop.permute.xlu0 %507
        %v511 = vsel %vm362, %v506, 0
        %513 = vmatprep.subr.bf16.mxu0 0
        %514 = vmatpush1.bf16.msra.mxu0 0
        %515 = vmatprep.subr.bf16.mxu0 0
        %516 = vmatpush1.bf16.msra.mxu0 0
        %517 = vmatprep.subr.bf16.mxu0 0
        %518 = vmatpush1.bf16.msra.mxu0 0
        %519 = vmatprep.subr.bf16.mxu0 0
        %520 = vmatpush1.bf16.msra.mxu0 0
        %521 = vmatprep.subr.bf16.mxu0 0
        %522 = vmatpush1.bf16.msra.mxu0 0
        %523 = vmatprep.subr.bf16.mxu0 0
        %524 = vmatpush1.bf16.msra.mxu0 0
        %525 = vmatprep.subr.bf16.mxu0 0
        %526 = vmatpush1.bf16.msra.mxu0 0
        %527 = vmatprep.subr.bf16.mxu0 0
        %528 = vmatpush1.bf16.msra.mxu0 %v508
        %529 = vmatprep.subr.bf16.mxu0 0
        %530 = vmatpush2.bf16.msra.mxu0 0
        %531 = vmatprep.subr.bf16.mxu0 0
        %532 = vmatpush2.bf16.msra.mxu0 0
        %533 = vmatprep.subr.bf16.mxu0 0
        %534 = vmatpush2.bf16.msra.mxu0 0
        %535 = vmatprep.subr.bf16.mxu0 0
        %536 = vmatpush2.bf16.msra.mxu0 0
        %537 = vmatprep.subr.bf16.mxu0 0
        %538 = vmatpush2.bf16.msra.mxu0 0
        %539 = vmatprep.subr.bf16.mxu0 0
        %540 = vmatpush2.bf16.msra.mxu0 0
        %541 = vmatprep.subr.bf16.mxu0 0
        %542 = vmatpush2.bf16.msra.mxu0 0
        %543 = vmatprep.subr.bf16.mxu0 0
        %544 = vmatpush2.bf16.msra.mxu0 0
        %545 = vmatprep.mubr.bf16.mxu0 0
        %546 = vmatmul.mubr.bf16.gmra.mxu0 %v511
        %v547 = vpop.f32.mrf.mxu0
        %v548 = vadd.f32 0.0, %v547
        %v549 = vpop.f32.mrf.mxu0
        %v550 = vpop.f32.mrf.mxu0
        %v551 = vadd.f32 0.0, %v550
        %v552 = vpop.f32.mrf.mxu0
        %553 = vdwg.mxu0
        %554 = vrot.lane.b32.xlu0 %v310, 112
        %v555 = vpop.permute.xlu0 %554
        %556 = vrot.lane.b32.xlu0 %v310, 80
        %v557 = vpop.permute.xlu0 %556
        %v559 = vsel %vm314, %v555, 0
        %v562 = vsel %vm314, %v557, 0
        %564 = vmatprep.subr.bf16.mxu0 0
        %565 = vmatpush1.bf16.xpose.msra.mxu0 0
        %566 = vmatprep.subr.bf16.mxu0 0
        %567 = vmatpush1.bf16.xpose.msra.mxu0 0
        %568 = vmatprep.subr.bf16.mxu0 0
        %569 = vmatpush1.bf16.xpose.msra.mxu0 0
        %570 = vmatprep.subr.bf16.mxu0 0
        %571 = vmatpush1.bf16.xpose.msra.mxu0 0
        %572 = vmatprep.subr.bf16.mxu0 0
        %573 = vmatpush1.bf16.xpose.msra.mxu0 0
        %574 = vmatprep.subr.bf16.mxu0 0
        %575 = vmatpush1.bf16.xpose.msra.mxu0 0
        %576 = vmatprep.subr.bf16.mxu0 0
        %577 = vmatpush1.bf16.xpose.msra.mxu0 0
        %578 = vmatprep.subr.bf16.mxu0 0
        %579 = vmatpush1.bf16.xpose.msra.mxu0 %v562
        %580 = vmatprep.subr.bf16.mxu0 0
        %581 = vmatpush2.bf16.xpose.msra.mxu0 0
        %582 = vmatprep.subr.bf16.mxu0 0
        %583 = vmatpush2.bf16.xpose.msra.mxu0 0
        %584 = vmatprep.subr.bf16.mxu0 0
        %585 = vmatpush2.bf16.xpose.msra.mxu0 0
        %586 = vmatprep.subr.bf16.mxu0 0
        %587 = vmatpush2.bf16.xpose.msra.mxu0 0
        %588 = vmatprep.subr.bf16.mxu0 0
        %589 = vmatpush2.bf16.xpose.msra.mxu0 0
        %590 = vmatprep.subr.bf16.mxu0 0
        %591 = vmatpush2.bf16.xpose.msra.mxu0 0
        %592 = vmatprep.subr.bf16.mxu0 0
        %593 = vmatpush2.bf16.xpose.msra.mxu0 0
        %594 = vmatprep.subr.bf16.mxu0 0
        %595 = vmatpush2.bf16.xpose.msra.mxu0 0
        %596 = vmatprep.mubr.bf16.mxu0 0
        %597 = vmatmul.mubr.bf16.gmra.mxu0 %v559
        %v598 = vpop.f32.mrf.mxu0
        %v599 = vadd.f32 0.0, %v598
        %v600 = vpop.f32.mrf.mxu0
        %v601 = vpop.f32.mrf.mxu0
        %v602 = vadd.f32 0.0, %v601
        %v603 = vpop.f32.mrf.mxu0
        %604 = vdwg.mxu0
        %v605 = vsel %vm362, %v599, -inf
        %606 = vmax.xlane.f32.xlu0 %v605
        %v607 = vpop.xlane.xlu0 %606
        %v608 = vsel %vm362, %v602, -inf
        %609 = vmax.xlane.f32.xlu0 %v608
        %v610 = vpop.xlane.xlu0 %609
        %v611 = vsub.f32 %v599, %v607
        %v612 = vsub.f32 %v602, %v610
        %v613 = vmul.f32 %v611, 1.442695
        %v614 = vpow.pop %v613
        %v615 = vmul.f32 %v612, 1.442695
        %v616 = vpow.pop %v615
        %v617 = vsel %vm362, %v614, 0.0
        %618 = vadd.xlane.f32.xlu0 %v617
        %v619 = vpop.xlane.xlu0 %618
        %v620 = vsel %vm362, %v616, 0.0
        %621 = vadd.xlane.f32.xlu0 %v620
        %v622 = vpop.xlane.xlu0 %621
        %v623 = vrcp.pop %v619
        %v624 = vrcp.pop %v622
        %v625 = vmul.f32 %v614, %v623
        %v626 = vmul.f32 %v616, %v624
        %v627 = vpack.c.bf16 %v626, %v625
        %628 = vrot.lane.b32.xlu0 %v310, 48
        %v629 = vpop.permute.xlu0 %628
        %v632 = vsel %vm362, %v627, 0
        %634 = vmatprep.subr.bf16.mxu0 0
        %635 = vmatpush1.bf16.msra.mxu0 0
        %636 = vmatprep.subr.bf16.mxu0 0
        %637 = vmatpush1.bf16.msra.mxu0 0
        %638 = vmatprep.subr.bf16.mxu0 0
        %639 = vmatpush1.bf16.msra.mxu0 0
        %640 = vmatprep.subr.bf16.mxu0 0
        %641 = vmatpush1.bf16.msra.mxu0 0
        %642 = vmatprep.subr.bf16.mxu0 0
        %643 = vmatpush1.bf16.msra.mxu0 0
        %644 = vmatprep.subr.bf16.mxu0 0
        %645 = vmatpush1.bf16.msra.mxu0 0
        %646 = vmatprep.subr.bf16.mxu0 0
        %647 = vmatpush1.bf16.msra.mxu0 0
        %648 = vmatprep.subr.bf16.mxu0 0
        %649 = vmatpush1.bf16.msra.mxu0 %v629
        %650 = vmatprep.subr.bf16.mxu0 0
        %651 = vmatpush2.bf16.msra.mxu0 0
        %652 = vmatprep.subr.bf16.mxu0 0
        %653 = vmatpush2.bf16.msra.mxu0 0
        %654 = vmatprep.subr.bf16.mxu0 0
        %655 = vmatpush2.bf16.msra.mxu0 0
        %656 = vmatprep.subr.bf16.mxu0 0
        %657 = vmatpush2.bf16.msra.mxu0 0
        %658 = vmatprep.subr.bf16.mxu0 0
        %659 = vmatpush2.bf16.msra.mxu0 0
        %660 = vmatprep.subr.bf16.mxu0 0
        %661 = vmatpush2.bf16.msra.mxu0 0
        %662 = vmatprep.subr.bf16.mxu0 0
        %663 = vmatpush2.bf16.msra.mxu0 0
        %664 = vmatprep.subr.bf16.mxu0 0
        %665 = vmatpush2.bf16.msra.mxu0 0
        %666 = vmatprep.mubr.bf16.mxu0 0
        %667 = vmatmul.mubr.bf16.gmra.mxu0 %v632
        %v668 = vpop.f32.mrf.mxu0
        %v669 = vadd.f32 0.0, %v668
        %v670 = vpop.f32.mrf.mxu0
        %v671 = vpop.f32.mrf.mxu0
        %v672 = vadd.f32 0.0, %v671
        %v673 = vpop.f32.mrf.mxu0
        %674 = vdwg.mxu0
        %675 = vrot.lane.b32.xlu0 %v310, 104
        %v676 = vpop.permute.xlu0 %675
        %677 = vrot.lane.b32.xlu0 %v310, 72
        %v678 = vpop.permute.xlu0 %677
        %v680 = vsel %vm314, %v676, 0
        %v683 = vsel %vm314, %v678, 0
        %685 = vmatprep.subr.bf16.mxu0 0
        %686 = vmatpush1.bf16.xpose.msra.mxu0 0
        %687 = vmatprep.subr.bf16.mxu0 0
        %688 = vmatpush1.bf16.xpose.msra.mxu0 0
        %689 = vmatprep.subr.bf16.mxu0 0
        %690 = vmatpush1.bf16.xpose.msra.mxu0 0
        %691 = vmatprep.subr.bf16.mxu0 0
        %692 = vmatpush1.bf16.xpose.msra.mxu0 0
        %693 = vmatprep.subr.bf16.mxu0 0
        %694 = vmatpush1.bf16.xpose.msra.mxu0 0
        %695 = vmatprep.subr.bf16.mxu0 0
        %696 = vmatpush1.bf16.xpose.msra.mxu0 0
        %697 = vmatprep.subr.bf16.mxu0 0
        %698 = vmatpush1.bf16.xpose.msra.mxu0 0
        %699 = vmatprep.subr.bf16.mxu0 0
        %700 = vmatpush1.bf16.xpose.msra.mxu0 %v683
        %701 = vmatprep.subr.bf16.mxu0 0
        %702 = vmatpush2.bf16.xpose.msra.mxu0 0
        %703 = vmatprep.subr.bf16.mxu0 0
        %704 = vmatpush2.bf16.xpose.msra.mxu0 0
        %705 = vmatprep.subr.bf16.mxu0 0
        %706 = vmatpush2.bf16.xpose.msra.mxu0 0
        %707 = vmatprep.subr.bf16.mxu0 0
        %708 = vmatpush2.bf16.xpose.msra.mxu0 0
        %709 = vmatprep.subr.bf16.mxu0 0
        %710 = vmatpush2.bf16.xpose.msra.mxu0 0
        %711 = vmatprep.subr.bf16.mxu0 0
        %712 = vmatpush2.bf16.xpose.msra.mxu0 0
        %713 = vmatprep.subr.bf16.mxu0 0
        %714 = vmatpush2.bf16.xpose.msra.mxu0 0
        %715 = vmatprep.subr.bf16.mxu0 0
        %716 = vmatpush2.bf16.xpose.msra.mxu0 0
        %717 = vmatprep.mubr.bf16.mxu0 0
        %718 = vmatmul.mubr.bf16.gmra.mxu0 %v680
        %v719 = vpop.f32.mrf.mxu0
        %v720 = vadd.f32 0.0, %v719
        %v721 = vpop.f32.mrf.mxu0
        %v722 = vpop.f32.mrf.mxu0
        %v723 = vadd.f32 0.0, %v722
        %v724 = vpop.f32.mrf.mxu0
        %725 = vdwg.mxu0
        %v726 = vsel %vm362, %v720, -inf
        %727 = vmax.xlane.f32.xlu0 %v726
        %v728 = vpop.xlane.xlu0 %727
        %v729 = vsel %vm362, %v723, -inf
        %730 = vmax.xlane.f32.xlu0 %v729
        %v731 = vpop.xlane.xlu0 %730
        %v732 = vsub.f32 %v720, %v728
        %v733 = vsub.f32 %v723, %v731
        %v734 = vmul.f32 %v732, 1.442695
        %v735 = vpow.pop %v734
        %v736 = vmul.f32 %v733, 1.442695
        %v737 = vpow.pop %v736
        %v738 = vsel %vm362, %v735, 0.0
        %739 = vadd.xlane.f32.xlu0 %v738
        %v740 = vpop.xlane.xlu0 %739
        %v741 = vsel %vm362, %v737, 0.0
        %742 = vadd.xlane.f32.xlu0 %v741
        %v743 = vpop.xlane.xlu0 %742
        %v744 = vrcp.pop %v740
        %v745 = vrcp.pop %v743
        %v746 = vmul.f32 %v735, %v744
        %v747 = vmul.f32 %v737, %v745
        %v748 = vpack.c.bf16 %v747, %v746
        %749 = vrot.lane.b32.xlu0 %v310, 40
        %v750 = vpop.permute.xlu0 %749
        %v753 = vsel %vm362, %v748, 0
        %755 = vmatprep.subr.bf16.mxu0 0
        %756 = vmatpush1.bf16.msra.mxu0 0
        %757 = vmatprep.subr.bf16.mxu0 0
        %758 = vmatpush1.bf16.msra.mxu0 0
        %759 = vmatprep.subr.bf16.mxu0 0
        %760 = vmatpush1.bf16.msra.mxu0 0
        %761 = vmatprep.subr.bf16.mxu0 0
        %762 = vmatpush1.bf16.msra.mxu0 0
        %763 = vmatprep.subr.bf16.mxu0 0
        %764 = vmatpush1.bf16.msra.mxu0 0
        %765 = vmatprep.subr.bf16.mxu0 0
        %766 = vmatpush1.bf16.msra.mxu0 0
        %767 = vmatprep.subr.bf16.mxu0 0
        %768 = vmatpush1.bf16.msra.mxu0 0
        %769 = vmatprep.subr.bf16.mxu0 0
        %770 = vmatpush1.bf16.msra.mxu0 %v750
        %771 = vmatprep.subr.bf16.mxu0 0
        %772 = vmatpush2.bf16.msra.mxu0 0
        %773 = vmatprep.subr.bf16.mxu0 0
        %774 = vmatpush2.bf16.msra.mxu0 0
        %775 = vmatprep.subr.bf16.mxu0 0
        %776 = vmatpush2.bf16.msra.mxu0 0
        %777 = vmatprep.subr.bf16.mxu0 0
        %778 = vmatpush2.bf16.msra.mxu0 0
        %779 = vmatprep.subr.bf16.mxu0 0
        %780 = vmatpush2.bf16.msra.mxu0 0
        %781 = vmatprep.subr.bf16.mxu0 0
        %782 = vmatpush2.bf16.msra.mxu0 0
        %783 = vmatprep.subr.bf16.mxu0 0
        %784 = vmatpush2.bf16.msra.mxu0 0
        %785 = vmatprep.subr.bf16.mxu0 0
        %786 = vmatpush2.bf16.msra.mxu0 0
        %787 = vmatprep.mubr.bf16.mxu0 0
        %788 = vmatmul.mubr.bf16.gmra.mxu0 %v753
        %v789 = vpop.f32.mrf.mxu0
        %v790 = vadd.f32 0.0, %v789
        %v791 = vpop.f32.mrf.mxu0
        %v792 = vpop.f32.mrf.mxu0
        %v793 = vadd.f32 0.0, %v792
        %v794 = vpop.f32.mrf.mxu0
        %795 = vdwg.mxu0
        %798 = vrot.lane.b32.xlu0 %v548, 8
        %v799 = vpop.permute.xlu0 %798
        %800 = vrot.lane.b32.xlu0 %v551, 8
        %v801 = vpop.permute.xlu0 %800
        %806 = vrot.lane.b32.xlu0 %v669, 16
        %v807 = vpop.permute.xlu0 %806
        %808 = vrot.lane.b32.xlu0 %v672, 16
        %v809 = vpop.permute.xlu0 %808
        %814 = vrot.lane.b32.xlu0 %v790, 24
        %v815 = vpop.permute.xlu0 %814
        %816 = vrot.lane.b32.xlu0 %v793, 24
        %v817 = vpop.permute.xlu0 %816
        %v820 = vsel %vm314, %v427, %v799
        %v821 = vsel %vm314, %v430, %v801
        %v822 = vsel %vm362, %v820, %v807
        %v823 = vsel %vm362, %v821, %v809
        %vm824 = vcmask 195584
        %v825 = vsel %vm824, %v822, %v815
        %v826 = vsel %vm824, %v823, %v817
        %v827 = vpack.c.bf16 %v826, %v825
        %v828 = vld [vmem:[#allocation7] sm:$0xf]
        %v829 = vld [vmem:[#allocation7 + $0x4] sm:$0xf]
        %v830 = vld [vmem:[#allocation7 + $0x8] sm:$0xf]
        %v831 = vld [vmem:[#allocation7 + $0xc] sm:$0xf]
        %v832 = vld [vmem:[%s3] sm:$0x1]
        %v834 = vlaneseq
        %v835 = vshrl.u32 %v834, 7
        %v836 = vsub.s32 0, %v835
        %v837 = vrot.slane %v832, %v836
        %v843 = vunpack.c.l.b16 %v828
        %v844 = vunpack.c.l.b16 %v829
        %v845 = vunpack.c.l.b16 %v830
        %v846 = vunpack.c.l.b16 %v831
        %v847 = vpack.c.b16 %v844, %v843
        %v848 = vpack.c.b16 %v846, %v845
        %v852 = vsel %vm265, %v827, 0
        %854 = vmatprep.subr.bf16.mxu0 0
        %855 = vmatpush1.bf16.msra.mxu0 0
        %856 = vmatprep.subr.bf16.mxu0 0
        %857 = vmatpush1.bf16.msra.mxu0 0
        %858 = vmatprep.subr.bf16.mxu0 0
        %859 = vmatpush1.bf16.msra.mxu0 0
        %860 = vmatprep.subr.bf16.mxu0 0
        %861 = vmatpush1.bf16.msra.mxu0 0
        %862 = vmatprep.subr.bf16.mxu0 0
        %863 = vmatpush1.bf16.msra.mxu0 0
        %864 = vmatprep.subr.bf16.mxu0 0
        %865 = vmatpush1.bf16.msra.mxu0 0
        %866 = vmatprep.subr.bf16.mxu0 0
        %867 = vmatpush1.bf16.msra.mxu0 %v848
        %868 = vmatprep.subr.bf16.mxu0 0
        %869 = vmatpush1.bf16.msra.mxu0 %v847
        %870 = vmatprep.subr.bf16.mxu0 0
        %871 = vmatpush2.bf16.msra.mxu0 0
        %872 = vmatprep.subr.bf16.mxu0 0
        %873 = vmatpush2.bf16.msra.mxu0 0
        %874 = vmatprep.subr.bf16.mxu0 0
        %875 = vmatpush2.bf16.msra.mxu0 0
        %876 = vmatprep.subr.bf16.mxu0 0
        %877 = vmatpush2.bf16.msra.mxu0 0
        %878 = vmatprep.subr.bf16.mxu0 0
        %879 = vmatpush2.bf16.msra.mxu0 0
        %880 = vmatprep.subr.bf16.mxu0 0
        %881 = vmatpush2.bf16.msra.mxu0 0
        %882 = vmatprep.subr.bf16.mxu0 0
        %883 = vmatpush2.bf16.msra.mxu0 0
        %884 = vmatprep.subr.bf16.mxu0 0
        %885 = vmatpush2.bf16.msra.mxu0 0
        %886 = vmatprep.mubr.bf16.mxu0 0
        %887 = vmatmul.mubr.bf16.gmra.mxu0 %v852
        %v888 = vpop.f32.mrf.mxu0
        %v889 = vadd.f32 %v837, %v888
        %v890 = vpop.f32.mrf.mxu0
        %v891 = vpop.f32.mrf.mxu0
        %v892 = vadd.f32 %v837, %v891
        %v893 = vpop.f32.mrf.mxu0
        %894 = vdwg.mxu0
        %895 = vst.msk [vmem:[%s244] sm:$0xff] %vm265, %v889
        %896 = vst.msk [vmem:[%s244 + $0x8] sm:$0xff] %vm265, %v892
        %s897 = sand.u32 %s119, 1
        %s898 = scalar_lea.sflag [#allocation4], %s897
        %s899 = sand.u32 %s119, 1
        %s900 = smul.addr %s899, 16
        %s901 = scalar_lea.vmem [#allocation8], %s900
        // Predicated region
        $region49: #{tpu_custom_call.1} parent=35 // pred_check
          %p902 = pneg %p129
        $region50: #{tpu_custom_call.1} parent=35 // pred_check_branch
          %904 = sbr.rel (%p902) target = $region52
        $region51: #{tpu_custom_call.1} parent=35 // pred_region
          %s906 = ssub.s32 256, 256
          %907 = vsyncadd %s898, %s906
          %s908 = smul.addr %s22, 2
          %s909 = smul.addr %s908, 128
          %s910 = scalar_lea.hbm %s4, %s909
          %s911 = sshll.u32 %s901, 4
          %s912 = int_to_ptr.vmem [resolvable:$true] %s911
          %917 = dma.vmem_to_hbm [thread:$0]  %s912, 256, %s910, %s898, 128, 128, 8
        $region52: #{tpu_custom_call.1} parent=35 // pred_fallthru
          _
      $region36: #{tpu_custom_call.1} parent=5 // pred_fallthru
        _
      %p918 = scmp.le.s32.totalorder 2, %s17
      // Predicated region
      $region53: #{tpu_custom_call.1} parent=5 // pred_check
        %p919 = pneg %p918
      $region54: #{tpu_custom_call.1} parent=5 // pred_check_branch
        %921 = sbr.rel (%p919) target = $region56
      $region55: #{tpu_custom_call.1} parent=5 // pred_region
        %s922 = ssub.s32 %s17, 2
        // Predicated region
        $region57: #{tpu_custom_call.1} parent=55 // pred_check
          %p923 = pneg %p135
        $region58: #{tpu_custom_call.1} parent=55 // pred_check_branch
          %925 = sbr.rel (%p923) target = $region60
        $region59: #{tpu_custom_call.1} parent=55 // pred_region
          %s926 = sand.u32 %s120, 1
          %s927 = scalar_lea.sflag [#allocation4], %s926
          %s928 = sand.u32 %s120, 1
          %s929 = smul.addr %s928, 16
          %s930 = scalar_lea.vmem [#allocation8], %s929
          %931 = dma.done %s927, 256
        $region60: #{tpu_custom_call.1} parent=55 // pred_fallthru
          _
      $region56: #{tpu_custom_call.1} parent=5 // pred_fallthru
        _
    $region6: #{tpu_custom_call.1} parent=1 // loop_footer
      %s21 = sadd.s32 1, %s17
    $region7: #{tpu_custom_call.1} parent=1 // loop_footer_branch
      %16 = sbr.rel target = $region3
    $region8: #{tpu_custom_call.1} parent=1 // loop_exit
      _
    %932 = vsyncpa [#allocation3], 1
    %s933 = scalar_lea.sflag [#allocation3], 1
    %934 = vsyncpa %s933, 1
    %935 = vsyncpa [#allocation6], 1
    %936 = vsyncpa [#allocation4], 1
    %s937 = scalar_lea.sflag [#allocation4], 1
    %938 = vsyncpa %s937, 1

</llo_original>
